<compile_context>
chip_gen: v5e
topology: v5e:2x2
jax: 0.10.0
libtpu: 0.0.40
codegen_flags: <defaults>
</compile_context>

<pallas_src>
import functools

import jax
import jax.numpy as jnp
from jax.experimental import pallas as pl
from jax.experimental.pallas import tpu as pltpu


def _round_up(x, m):
    return (x + m - 1) // m * m


def _branch_kernel(theta_ref, w1_ref, b1_ref, wr_ref, br_ref, out_ref,
                   *, log_output: bool):
    """One (branch, row-tile) grid step.

    Linear(z_dim,128) -> ReLU -> [eval-BN folded into recon weights] ->
    Linear(128, Mpad) -> (log_)softmax over the last dim.
    Padded output columns carry a -1e30 bias so they contribute ~0 to the
    softmax denominator and are sliced off by the wrapper.
    """
    theta = theta_ref[...]                                    # (Nt, z)   f32
    w1 = w1_ref[0]                                            # (z, 128)  param dtype
    wr = wr_ref[0]                                            # (128, Mpad)

    # f = Linear(z_dim, 128); accumulate in f32 on the MXU.
    h = jnp.dot(theta.astype(w1.dtype), w1,
                preferred_element_type=jnp.float32) + b1_ref[0]       # (Nt, 128)
    h = jnp.maximum(h, 0.0)                                   # ReLU
    # Dropout(p=0.1): identity in eval mode.
    # BatchNorm1d (eval): already folded into wr/br by the wrapper.

    # recon = Linear(128, Mpad)
    logits = jnp.dot(h.astype(wr.dtype), wr,
                     preferred_element_type=jnp.float32) + br_ref[0]   # (Nt, Mpad)

    # Numerically-stable (log_)softmax along the last dim (all f32).
    m = jnp.max(logits, axis=-1, keepdims=True)
    shifted = logits - m
    exp_s = jnp.exp(shifted)
    denom = jnp.sum(exp_s, axis=-1, keepdims=True)
    if log_output:
        out = shifted - jnp.log(denom)
    else:
        # approx=False kept: the probability path is validated at tight tol.
        out = exp_s * pl.reciprocal(denom, approx=False)
    out_ref[0] = out.astype(out_ref.dtype)


def _choose_row_tile(n, mpad, requested):
    """Pick a row tile (multiple of 8) that keeps the (Nt, Mpad) f32 output
    tile (double-buffered) plus the in-kernel logits/exp intermediates well
    inside VMEM, even on v7x (64 MiB physical)."""
    nt = min(requested, _round_up(n, 8))
    out_tile_budget = 8 * 1024 * 1024           # bytes for ONE output buffer
    max_rows = (out_tile_budget // (mpad * 4)) // 8 * 8
    nt = min(nt, max(8, max_rows))
    return max(8, nt)


def _decoder_forward(theta, w1s, b1s, wrs, brs, *, log_output, n_block_rows):
    """theta:(N,z) f32; w1s:(2,z,128); b1s:(2,1,128); wrs:(2,128,Mpad);
    brs:(2,1,Mpad).  Returns (2, N, Mpad) f32."""
    n, z = theta.shape
    n_branch, _, mpad = wrs.shape

    nt = _choose_row_tile(n, mpad, n_block_rows)
    npad = _round_up(n, nt)
    if npad != n:
        theta = jnp.pad(theta, ((0, npad - n), (0, 0)))

    grid = (n_branch, npad // nt)               # branch OUTER: Wr DMA'd once/branch
    kern = functools.partial(_branch_kernel, log_output=log_output)

    out = pl.pallas_call(
        kern,
        out_shape=jax.ShapeDtypeStruct((n_branch, npad, mpad), jnp.float32),
        grid_spec=pltpu.PrefetchScalarGridSpec(
            num_scalar_prefetch=0,
            grid=grid,
            in_specs=[
                pl.BlockSpec((nt, z), lambda b, i: (i, 0)),            # theta rows
                pl.BlockSpec((1, z, 128), lambda b, i: (b, 0, 0)),     # W1 per branch
                pl.BlockSpec((1, 1, 128), lambda b, i: (b, 0, 0)),     # b1
                pl.BlockSpec((1, 128, mpad), lambda b, i: (b, 0, 0)),  # folded Wr
                pl.BlockSpec((1, 1, mpad), lambda b, i: (b, 0, 0)),    # folded br
            ],
            out_specs=pl.BlockSpec((1, nt, mpad), lambda b, i: (b, i, 0)),
        ),
        compiler_params=pltpu.CompilerParams(
            dimension_semantics=("parallel", "parallel"),
            vmem_limit_bytes=48 * 1024 * 1024),
    )(theta, w1s, b1s, wrs, brs)
    return out[:, :n, :]


class DecoderSCMMPallas:
    """Pallas/JAX port of decoder_scMM (eval-mode forward)."""

    HIDDEN = 128
    BN_EPS = 1e-5
    _PAD_NEG = -1e30

    def __init__(self, mod1_dim, mod2_dim, z_dim, num_batch, key,
                 param_dtype=jnp.float32, n_block_rows=256):
        del num_batch  # unused in the reference forward pass
        assert n_block_rows % 8 == 0
        self.mod1_dim, self.mod2_dim, self.z_dim = mod1_dim, mod2_dim, z_dim
        self.param_dtype = param_dtype
        self.n_block_rows = n_block_rows
        H = self.HIDDEN
        ks = jax.random.split(key, 8)

        def linear(kw, kb, fan_in, fan_out):
            bound = 1.0 / jnp.sqrt(fan_in)
            w = jax.random.uniform(kw, (fan_in, fan_out), jnp.float32, -bound, bound)
            b = jax.random.uniform(kb, (1, fan_out), jnp.float32, -bound, bound)
            return w, b

        # modality 1 branch (f32 master copies)
        self.w_f1, self.b_f1 = linear(ks[0], ks[1], z_dim, H)
        self.w_r1, self.b_r1 = linear(ks[2], ks[3], H, mod1_dim)
        self.bn1_gamma = jnp.ones((1, H), jnp.float32)
        self.bn1_beta = jnp.zeros((1, H), jnp.float32)
        self.bn1_mean = jnp.zeros((1, H), jnp.float32)
        self.bn1_var = jnp.ones((1, H), jnp.float32)

        # modality 2 branch
        self.w_f2, self.b_f2 = linear(ks[4], ks[5], z_dim, H)
        self.w_r2, self.b_r2 = linear(ks[6], ks[7], H, mod2_dim)
        self.bn2_gamma = jnp.ones((1, H), jnp.float32)
        self.bn2_beta = jnp.zeros((1, H), jnp.float32)
        self.bn2_mean = jnp.zeros((1, H), jnp.float32)
        self.bn2_var = jnp.ones((1, H), jnp.float32)

    # --- fold eval-BN into recon weights, pad mod dims, stack branches ------
    def _fold_and_stack(self):
        H = self.HIDDEN
        mpad = _round_up(max(self.mod1_dim, self.mod2_dim), 128)

        def fold(gamma, beta, mean, var, wr, br, mod_dim):
            scale = gamma * jax.lax.rsqrt(var + self.BN_EPS)        # (1, H)
            shift = beta - mean * scale                             # (1, H)
            wr_f = scale.reshape(H, 1) * wr                         # (H, mod)
            br_f = shift @ wr + br                                  # (1, mod)
            pad = mpad - mod_dim
            wr_f = jnp.pad(wr_f, ((0, 0), (0, pad)))
            br_f = jnp.pad(br_f, ((0, 0), (0, pad)),
                           constant_values=self._PAD_NEG)           # mask padded cols
            return wr_f, br_f

        wr1, br1 = fold(self.bn1_gamma, self.bn1_beta, self.bn1_mean,
                        self.bn1_var, self.w_r1, self.b_r1, self.mod1_dim)
        wr2, br2 = fold(self.bn2_gamma, self.bn2_beta, self.bn2_mean,
                        self.bn2_var, self.w_r2, self.b_r2, self.mod2_dim)

        w1s = jnp.stack([self.w_f1, self.w_f2]).astype(self.param_dtype)  # (2,z,128)
        b1s = jnp.stack([self.b_f1, self.b_f2])                           # (2,1,128) f32
        wrs = jnp.stack([wr1, wr2]).astype(self.param_dtype)              # (2,128,Mpad)
        brs = jnp.stack([br1, br2])                                       # (2,1,Mpad) f32
        return w1s, b1s, wrs, brs

    def __call__(self, theta, batch_indices=None, cross_prediction=False):
        del batch_indices  # unused in the reference forward pass
        w1s, b1s, wrs, brs = self._fold_and_stack()
        out = _decoder_forward(theta, w1s, b1s, wrs, brs,
                               log_output=not cross_prediction,
                               n_block_rows=self.n_block_rows)
        recon_log_mod1 = out[0, :, :self.mod1_dim]
        recon_log_mod2 = out[1, :, :self.mod2_dim]
        return recon_log_mod1, recon_log_mod2


# ----------------------------- references -----------------------------------
def _reference_unfolded(model, theta, log_output=True):
    """Pure-JAX reference mirroring the original PyTorch module (eval mode)."""
    def branch(w1, b1, g, be, mu, var, wr, br):
        h = jnp.maximum(theta @ w1 + b1, 0.0)
        h = (h - mu) * jax.lax.rsqrt(var + model.BN_EPS) * g + be
        logits = h @ wr + br
        return (jax.nn.log_softmax(logits, -1) if log_output
                else jax.nn.softmax(logits, -1))
    r1 = branch(model.w_f1, model.b_f1, model.bn1_gamma, model.bn1_beta,
                model.bn1_mean, model.bn1_var, model.w_r1, model.b_r1)
    r2 = branch(model.w_f2, model.b_f2, model.bn2_gamma, model.bn2_beta,
                model.bn2_mean, model.bn2_var, model.w_r2, model.b_r2)
    return r1, r2


def _reference_folded(model, theta, log_output=True):
    """Same math as the kernel (folded BN), pure JAX — identical operands."""
    w1s, b1s, wrs, brs = model._fold_and_stack()
    outs = []
    for b, mod_dim in ((0, model.mod1_dim), (1, model.mod2_dim)):
        h = jnp.maximum(theta.astype(w1s.dtype) @ w1s[b] + b1s[b], 0.0)
        logits = h.astype(wrs.dtype) @ wrs[b] + brs[b]
        o = (jax.nn.log_softmax(logits, -1) if log_output
             else jax.nn.softmax(logits, -1))
        outs.append(o[:, :mod_dim])
    return outs


if __name__ == "__main__":
    key = jax.random.PRNGKey(0)
    k_theta, k_params, k_bn = jax.random.split(key, 3)

    # Small shapes: exercise row padding (N not a multiple of the tile) and
    # column padding (mod dims not multiples of 128), multi-step grid.
    N, Z_DIM, MOD1_DIM, MOD2_DIM, NUM_BATCH = 20, 32, 200, 384, 4

    def randomize_bn(m, kb):
        ks = jax.random.split(kb, 8)
        H = m.HIDDEN
        m.bn1_gamma = 0.5 + jax.random.uniform(ks[0], (1, H), jnp.float32)
        m.bn1_beta = 0.3 * jax.random.normal(ks[1], (1, H), jnp.float32)
        m.bn1_mean = 0.3 * jax.random.normal(ks[2], (1, H), jnp.float32)
        m.bn1_var = 0.5 + jax.random.uniform(ks[3], (1, H), jnp.float32)
        m.bn2_gamma = 0.5 + jax.random.uniform(ks[4], (1, H), jnp.float32)
        m.bn2_beta = 0.3 * jax.random.normal(ks[5], (1, H), jnp.float32)
        m.bn2_mean = 0.3 * jax.random.normal(ks[6], (1, H), jnp.float32)
        m.bn2_var = 0.5 + jax.random.uniform(ks[7], (1, H), jnp.float32)

    model = DecoderSCMMPallas(MOD1_DIM, MOD2_DIM, Z_DIM, NUM_BATCH, k_params,
                              param_dtype=jnp.float32, n_block_rows=8)
    randomize_bn(model, k_bn)  # non-trivial BN so the eval-BN fold is tested

    theta = jax.random.normal(k_theta, (N, Z_DIM), jnp.float32)
    batch_indices = jnp.zeros((N,), jnp.int32)  # unused by forward

    # log_softmax path
    out1, out2 = model(theta, batch_indices, cross_prediction=False)
    jax.block_until_ready((out1, out2))
    assert out1.shape == (N, MOD1_DIM) and out2.shape == (N, MOD2_DIM)

    f1, f2 = _reference_folded(model, theta, log_output=True)
    assert jnp.allclose(out1, f1, atol=1e-4, rtol=1e-4)
    assert jnp.allclose(out2, f2, atol=1e-4, rtol=1e-4)

    u1, u2 = _reference_unfolded(model, theta, log_output=True)
    assert jnp.allclose(out1, u1, atol=5e-3, rtol=5e-3)  # folded vs unfolded BN
    assert jnp.allclose(out2, u2, atol=5e-3, rtol=5e-3)

    # softmax path (cross_prediction=True)
    p1, p2 = model(theta, batch_indices, cross_prediction=True)
    jax.block_until_ready((p1, p2))
    pf1, pf2 = _reference_folded(model, theta, log_output=False)
    assert jnp.allclose(p1, pf1, atol=1e-5, rtol=1e-4)
    assert jnp.allclose(p2, pf2, atol=1e-5, rtol=1e-4)

    # Larger-tile config (default 256-row tile, single grid step over rows).
    model_big = DecoderSCMMPallas(MOD1_DIM, MOD2_DIM, Z_DIM, NUM_BATCH, k_params,
                                  param_dtype=jnp.float32, n_block_rows=256)
    randomize_bn(model_big, k_bn)
    g1, g2 = model_big(theta, batch_indices, cross_prediction=False)
    jax.block_until_ready((g1, g2))
    assert jnp.allclose(g1, f1, atol=1e-4, rtol=1e-4)
    assert jnp.allclose(g2, f2, atol=1e-4, rtol=1e-4)

    # bf16-weight path (v6e/v7x bandwidth optimization) — looser tolerance.
    model_bf16 = DecoderSCMMPallas(MOD1_DIM, MOD2_DIM, Z_DIM, NUM_BATCH, k_params,
                                   param_dtype=jnp.bfloat16, n_block_rows=8)
    randomize_bn(model_bf16, k_bn)
    b1o, b2o = model_bf16(theta, batch_indices, cross_prediction=False)
    jax.block_until_ready((b1o, b2o))
    assert jnp.allclose(b1o, u1, atol=5e-2, rtol=5e-2)
    assert jnp.allclose(b2o, u2, atol=5e-2, rtol=5e-2)

    print("KERNEL_OK")
</pallas_src>

<mosaic_0001>
module attributes {stable_mosaic.version = 11 : i64} {
  func.func @_branch_kernel(%arg0: i32, %arg1: i32, %arg2: memref<8x32xf32, #tpu.memory_space<vmem>>, %arg3: memref<1x32x128xf32, #tpu.memory_space<vmem>>, %arg4: memref<1x1x128xf32, #tpu.memory_space<vmem>>, %arg5: memref<1x128x384xf32, #tpu.memory_space<vmem>>, %arg6: memref<1x1x384xf32, #tpu.memory_space<vmem>>, %arg7: memref<1x8x384xf32, #tpu.memory_space<vmem>>) attributes {dimension_semantics = [#tpu.dimension_semantics<parallel>, #tpu.dimension_semantics<parallel>], iteration_bounds = array<i64: 2, 3>, scalar_prefetch = 0 : i64, scratch_operands = 0 : i64, tpu.core_type = #tpu.core_type<tc>, window_params = [{transform_indices = @transform_0, window_bounds = array<i64: 8, 32>}, {transform_indices = @transform_1, window_bounds = array<i64: 1, 32, 128>}, {transform_indices = @transform_2, window_bounds = array<i64: 1, 1, 128>}, {transform_indices = @transform_3, window_bounds = array<i64: 1, 128, 384>}, {transform_indices = @transform_4, window_bounds = array<i64: 1, 1, 384>}, {transform_indices = @transform_5, window_bounds = array<i64: 1, 8, 384>}]} {
    %c0 = arith.constant 0 : index
    %c0_0 = arith.constant 0 : index
    %0 = vector.load %arg2[%c0, %c0_0] : memref<8x32xf32, #tpu.memory_space<vmem>>, vector<8x32xf32>
    %c0_1 = arith.constant 0 : index
    %c0_2 = arith.constant 0 : index
    %c0_3 = arith.constant 0 : index
    %1 = vector.load %arg3[%c0_1, %c0_2, %c0_3] : memref<1x32x128xf32, #tpu.memory_space<vmem>>, vector<1x32x128xf32>
    %2 = vector.shape_cast %1 : vector<1x32x128xf32> to vector<32x128xf32>
    %c0_4 = arith.constant 0 : index
    %c0_5 = arith.constant 0 : index
    %c0_6 = arith.constant 0 : index
    %3 = vector.load %arg5[%c0_4, %c0_5, %c0_6] : memref<1x128x384xf32, #tpu.memory_space<vmem>>, vector<1x128x384xf32>
    %4 = vector.shape_cast %3 : vector<1x128x384xf32> to vector<128x384xf32>
    %cst = arith.constant dense<0.000000e+00> : vector<8x128xf32>
    %5 = tpu.matmul %0, %2, %cst {dimension_numbers = #tpu.dot_dimension_numbers<[1], [0], [0], [1], [0, 0, 1, 1], [], []>} : vector<8x32xf32>, vector<32x128xf32>, vector<8x128xf32> -> vector<8x128xf32>
    %c0_7 = arith.constant 0 : index
    %c0_8 = arith.constant 0 : index
    %c0_9 = arith.constant 0 : index
    %6 = vector.load %arg4[%c0_7, %c0_8, %c0_9] : memref<1x1x128xf32, #tpu.memory_space<vmem>>, vector<1x1x128xf32>
    %7 = vector.shape_cast %6 : vector<1x1x128xf32> to vector<1x128xf32>
    %8 = vector.broadcast %7 : vector<1x128xf32> to vector<8x128xf32>
    %9 = arith.addf %5, %8 : vector<8x128xf32>
    %cst_10 = arith.constant 0.000000e+00 : f32
    %10 = vector.broadcast %cst_10 : f32 to vector<8x128xf32>
    %11 = arith.maximumf %9, %10 : vector<8x128xf32>
    %cst_11 = arith.constant dense<0.000000e+00> : vector<8x384xf32>
    %12 = tpu.matmul %11, %4, %cst_11 {dimension_numbers = #tpu.dot_dimension_numbers<[1], [0], [0], [1], [0, 0, 1, 1], [], []>} : vector<8x128xf32>, vector<128x384xf32>, vector<8x384xf32> -> vector<8x384xf32>
    %c0_12 = arith.constant 0 : index
    %c0_13 = arith.constant 0 : index
    %c0_14 = arith.constant 0 : index
    %13 = vector.load %arg6[%c0_12, %c0_13, %c0_14] : memref<1x1x384xf32, #tpu.memory_space<vmem>>, vector<1x1x384xf32>
    %14 = vector.shape_cast %13 : vector<1x1x384xf32> to vector<1x384xf32>
    %15 = vector.broadcast %14 : vector<1x384xf32> to vector<8x384xf32>
    %16 = arith.addf %12, %15 : vector<8x384xf32>
    %cst_15 = arith.constant dense<0xFF800000> : vector<8xf32>
    %17 = vector.multi_reduction <maximumf>, %16, %cst_15 [1] : vector<8x384xf32> to vector<8xf32>
    %18 = vector.shape_cast %17 : vector<8xf32> to vector<8x1xf32>
    %19 = vector.broadcast %18 : vector<8x1xf32> to vector<8x384xf32>
    %20 = arith.subf %16, %19 : vector<8x384xf32>
    %21 = math.exp %20 : vector<8x384xf32>
    %cst_16 = arith.constant dense<0.000000e+00> : vector<8xf32>
    %22 = vector.multi_reduction <add>, %21, %cst_16 [1] : vector<8x384xf32> to vector<8xf32>
    %23 = vector.shape_cast %22 : vector<8xf32> to vector<8x1xf32>
    %24 = math.log %23 : vector<8x1xf32>
    %25 = vector.broadcast %24 : vector<8x1xf32> to vector<8x384xf32>
    %26 = arith.subf %20, %25 : vector<8x384xf32>
    %c0_17 = arith.constant 0 : index
    %c0_18 = arith.constant 0 : index
    %c0_19 = arith.constant 0 : index
    %27 = vector.load %arg7[%c0_17, %c0_18, %c0_19] : memref<1x8x384xf32, #tpu.memory_space<vmem>>, vector<1x8x384xf32>
    %28 = vector.shape_cast %27 : vector<1x8x384xf32> to vector<8x384xf32>
    %29 = vector.shape_cast %26 : vector<8x384xf32> to vector<1x8x384xf32>
    tpu.vector_store %arg7[%c0_17, %c0_18, %c0_19], %29 {strides = array<i32>} : memref<1x8x384xf32, #tpu.memory_space<vmem>>, vector<1x8x384xf32>,
    return
  }
  func.func @transform_0(%arg0: i32, %arg1: i32) -> (i32, i32) {
    %c0_i32 = arith.constant 0 : i32
    %c0_i32_0 = arith.constant 0 : i32
    return %arg1, %c0_i32 : i32, i32
  }
  func.func @transform_1(%arg0: i32, %arg1: i32) -> (i32, i32, i32) {
    %c0_i32 = arith.constant 0 : i32
    %c0_i32_0 = arith.constant 0 : i32
    %c0_i32_1 = arith.constant 0 : i32
    return %arg0, %c0_i32, %c0_i32_0 : i32, i32, i32
  }
  func.func @transform_2(%arg0: i32, %arg1: i32) -> (i32, i32, i32) {
    %c0_i32 = arith.constant 0 : i32
    %c0_i32_0 = arith.constant 0 : i32
    %c0_i32_1 = arith.constant 0 : i32
    return %arg0, %c0_i32, %c0_i32_0 : i32, i32, i32
  }
  func.func @transform_3(%arg0: i32, %arg1: i32) -> (i32, i32, i32) {
    %c0_i32 = arith.constant 0 : i32
    %c0_i32_0 = arith.constant 0 : i32
    %c0_i32_1 = arith.constant 0 : i32
    return %arg0, %c0_i32, %c0_i32_0 : i32, i32, i32
  }
  func.func @transform_4(%arg0: i32, %arg1: i32) -> (i32, i32, i32) {
    %c0_i32 = arith.constant 0 : i32
    %c0_i32_0 = arith.constant 0 : i32
    %c0_i32_1 = arith.constant 0 : i32
    return %arg0, %c0_i32, %c0_i32_0 : i32, i32, i32
  }
  func.func @transform_5(%arg0: i32, %arg1: i32) -> (i32, i32, i32) {
    %c0_i32 = arith.constant 0 : i32
    %c0_i32_0 = arith.constant 0 : i32
    return %arg0, %arg1, %c0_i32 : i32, i32, i32
  }
}

</mosaic_0001>

<llo_original>
// kernel: tpu_custom_call.1
$region0: #{tpu_custom_call.1}
  #allocation0 [shape = 'u32[]', space=smem, size = 0x4, offset = 0x4, fixed_abs, tag = 'smem constant byte address 0x4 - core index']
  #allocation1 [shape = 'u32[72,128]{1,0:T(1,128)}', space=vmem, size = 0x9000, scoped, tag = 'internal scratch']
  %s0 = inlined_call_operand.hbm [shape: f32[24,32], index: 0, kind: input, shape index: {}]
  %s1 = inlined_call_operand.hbm [shape: f32[2,32,128], index: 1, kind: input, shape index: {}]
  %s2 = inlined_call_operand.hbm [shape: f32[2,1,128], index: 2, kind: input, shape index: {}]
  %s3 = inlined_call_operand.hbm [shape: f32[2,128,384], index: 3, kind: input, shape index: {}]
  %s4 = inlined_call_operand.hbm [shape: f32[2,1,384], index: 4, kind: input, shape index: {}]
  %s5 = inlined_call_operand.hbm [shape: f32[2,24,384], index: 5, kind: output, shape index: {}]
  %s6 = sld [smem:[#allocation0]]
  $region73: #{tpu_custom_call.1} parent=0
    _
  %s8 = ssub.s32 1, %s6
  %s9 = scalar_select 0, %s8, %s6
  $region1: #{tpu_custom_call.1} parent=0
    #allocation2 [shape = 'u8[8192]{0}', space=vmem, size = 0x2000, scoped, tag = 'input window, operand 0']
    #allocation3 [shape = 's32[2]{0}', space=sflag, size = 0x8, scoped, tag = 'scoped memory for tpu_custom_call.1']
    #allocation4 [shape = 's32[2]{0}', space=sflag, size = 0x8, scoped, tag = 'scoped memory for tpu_custom_call.1']
    #allocation5 [shape = 'u8[32768]{0}', space=vmem, size = 0x8000, scoped, tag = 'input window, operand 1']
    #allocation6 [shape = 's32[2]{0}', space=sflag, size = 0x8, scoped, tag = 'scoped memory for tpu_custom_call.1']
    #allocation7 [shape = 'u8[1024]{0}', space=vmem, size = 0x400, scoped, tag = 'input window, operand 2']
    #allocation8 [shape = 'u8[393216]{0}', space=vmem, size = 0x60000, scoped, tag = 'input window, operand 3']
    #allocation9 [shape = 's32[2]{0}', space=sflag, size = 0x8, scoped, tag = 'scoped memory for tpu_custom_call.1']
    #allocation10 [shape = 'u8[3072]{0}', space=vmem, size = 0xc00, scoped, tag = 'input window, operand 4']
    #allocation11 [shape = 'u8[24576]{0}', space=vmem, size = 0x6000, scoped, tag = 'output window, operand 0']
    %10 = vsyncpa [#allocation3], 0
    %s11 = scalar_lea.sflag [#allocation3], 1
    %12 = vsyncpa %s11, 0
    %13 = vsyncpa [#allocation6], 0
    %s14 = scalar_lea.sflag [#allocation6], 1
    %15 = vsyncpa %s14, 0
    %16 = vsyncpa [#allocation9], 0
    %s17 = scalar_lea.sflag [#allocation9], 1
    %18 = vsyncpa %s17, 0
    %19 = vsyncpa [#allocation4], 0
    %s20 = scalar_lea.sflag [#allocation4], 1
    %21 = vsyncpa %s20, 0
    loop: start=0, step=1, limit=8
    $region2: #{tpu_custom_call.1} parent=1 // loop_pre_header
      _
    $region3: #{tpu_custom_call.1} parent=1 // loop_header
      %s23 = sphi 0, %s27
      %p24 = scmp.ge.s32.totalorder %s23, 8
      %s30 = sphi 0, %s42
      %s31 = sphi 0, %s38
      %s32 = sphi 0, %s30
      %s33 = sphi 0, %s31
      %s34 = sphi 0, %s32
      %s35 = sphi 0, %s33
      %s45 = sphi 0, %s47
      %s48 = sphi 0, %s45
      %s49 = sphi 0, %s48
      %s65 = sphi 0, %s49
      %s71 = sphi 0, %s73
      %s74 = sphi 0, %s71
      %s75 = sphi 0, %s74
      %s91 = sphi 0, %s75
      %s97 = sphi 0, %s99
      %s100 = sphi 0, %s97
      %s101 = sphi 0, %s100
      %s117 = sphi 0, %s101
      %s123 = sphi 0, %s125
      %s126 = sphi 0, %s123
      %s127 = sphi 0, %s126
      %s143 = sphi 0, %s127
      %s149 = sphi 0, %s151
      %s152 = sphi 0, %s149
      %s153 = sphi 0, %s152
      %s169 = sphi 0, %s153
      %s177 = sphi 0, %s179
      %s180 = sphi 0, %s177
      %s181 = sphi 0, %s180
      %s197 = sphi 0, %s181
    $region4: #{tpu_custom_call.1} parent=1 // loop_header_branch
      %26 = sbr.rel (%p24) target = $region8
    $region5: #{tpu_custom_call.1} parent=1 // loop_body
      %s28 = ssub.s32 %s23, 1
      %s29 = ssub.s32 %s23, 2
      %s36 = sadd.s32 1, %s31
      %p37 = scmp.ge.s32.totalorder %s36, 3
      %s38 = scalar_select %p37, 0, %s36
      %s39 = sadd.s32 1, %s30
      %s40 = scalar_select %p37, %s39, %s30
      %p41 = scmp.ge.s32.totalorder %s40, 2
      %s42 = scalar_select %p41, 0, %s40
      %s43 = ssub.s32 %s31, %s38
      %p44 = scmp.eq.s32.totalorder %s43, 0
      %s46 = sadd.s32 %s45, 1
      %s47 = scalar_select %p44, %s45, %s46
      %p50 = pneg %p44
      %p51 = scmp.eq.s32.totalorder %s23, 5
      %p52 = por %p50, %p51
      %p53 = scmp.ne.s32.totalorder %s45, %s48
      %p54 = scmp.eq.s32.totalorder %s23, 0
      %p55 = por %p53, %p54
      %p56 = scmp.ne.s32.totalorder %s45, %s48
      %p57 = scmp.eq.s32.totalorder %s28, 5
      %p58 = por %p56, %p57
      %p59 = scmp.ne.s32.totalorder %s48, %s49
      %p60 = scmp.eq.s32.totalorder %s28, 0
      %p61 = por %p59, %p60
      %p62 = scmp.ne.s32.totalorder %s48, %s49
      %p63 = scmp.eq.s32.totalorder %s29, 5
      %p64 = por %p62, %p63
      %p66 = scmp.ne.s32.totalorder %s49, %s65
      %p67 = scmp.eq.s32.totalorder %s29, 0
      %p68 = por %p66, %p67
      %s69 = ssub.s32 %s30, %s42
      %p70 = scmp.eq.s32.totalorder %s69, 0
      %s72 = sadd.s32 %s71, 1
      %s73 = scalar_select %p70, %s71, %s72
      %p76 = pneg %p70
      %p77 = scmp.eq.s32.totalorder %s23, 5
      %p78 = por %p76, %p77
      %p79 = scmp.ne.s32.totalorder %s71, %s74
      %p80 = scmp.eq.s32.totalorder %s23, 0
      %p81 = por %p79, %p80
      %p82 = scmp.ne.s32.totalorder %s71, %s74
      %p83 = scmp.eq.s32.totalorder %s28, 5
      %p84 = por %p82, %p83
      %p85 = scmp.ne.s32.totalorder %s74, %s75
      %p86 = scmp.eq.s32.totalorder %s28, 0
      %p87 = por %p85, %p86
      %p88 = scmp.ne.s32.totalorder %s74, %s75
      %p89 = scmp.eq.s32.totalorder %s29, 5
      %p90 = por %p88, %p89
      %p92 = scmp.ne.s32.totalorder %s75, %s91
      %p93 = scmp.eq.s32.totalorder %s29, 0
      %p94 = por %p92, %p93
      %s95 = ssub.s32 %s30, %s42
      %p96 = scmp.eq.s32.totalorder %s95, 0
      %s98 = sadd.s32 %s97, 1
      %s99 = scalar_select %p96, %s97, %s98
      %p102 = pneg %p96
      %p103 = scmp.eq.s32.totalorder %s23, 5
      %p104 = por %p102, %p103
      %p105 = scmp.ne.s32.totalorder %s97, %s100
      %p106 = scmp.eq.s32.totalorder %s23, 0
      %p107 = por %p105, %p106
      %p108 = scmp.ne.s32.totalorder %s97, %s100
      %p109 = scmp.eq.s32.totalorder %s28, 5
      %p110 = por %p108, %p109
      %p111 = scmp.ne.s32.totalorder %s100, %s101
      %p112 = scmp.eq.s32.totalorder %s28, 0
      %p113 = por %p111, %p112
      %p114 = scmp.ne.s32.totalorder %s100, %s101
      %p115 = scmp.eq.s32.totalorder %s29, 5
      %p116 = por %p114, %p115
      %p118 = scmp.ne.s32.totalorder %s101, %s117
      %p119 = scmp.eq.s32.totalorder %s29, 0
      %p120 = por %p118, %p119
      %s121 = ssub.s32 %s30, %s42
      %p122 = scmp.eq.s32.totalorder %s121, 0
      %s124 = sadd.s32 %s123, 1
      %s125 = scalar_select %p122, %s123, %s124
      %p128 = pneg %p122
      %p129 = scmp.eq.s32.totalorder %s23, 5
      %p130 = por %p128, %p129
      %p131 = scmp.ne.s32.totalorder %s123, %s126
      %p132 = scmp.eq.s32.totalorder %s23, 0
      %p133 = por %p131, %p132
      %p134 = scmp.ne.s32.totalorder %s123, %s126
      %p135 = scmp.eq.s32.totalorder %s28, 5
      %p136 = por %p134, %p135
      %p137 = scmp.ne.s32.totalorder %s126, %s127
      %p138 = scmp.eq.s32.totalorder %s28, 0
      %p139 = por %p137, %p138
      %p140 = scmp.ne.s32.totalorder %s126, %s127
      %p141 = scmp.eq.s32.totalorder %s29, 5
      %p142 = por %p140, %p141
      %p144 = scmp.ne.s32.totalorder %s127, %s143
      %p145 = scmp.eq.s32.totalorder %s29, 0
      %p146 = por %p144, %p145
      %s147 = ssub.s32 %s30, %s42
      %p148 = scmp.eq.s32.totalorder %s147, 0
      %s150 = sadd.s32 %s149, 1
      %s151 = scalar_select %p148, %s149, %s150
      %p154 = pneg %p148
      %p155 = scmp.eq.s32.totalorder %s23, 5
      %p156 = por %p154, %p155
      %p157 = scmp.ne.s32.totalorder %s149, %s152
      %p158 = scmp.eq.s32.totalorder %s23, 0
      %p159 = por %p157, %p158
      %p160 = scmp.ne.s32.totalorder %s149, %s152
      %p161 = scmp.eq.s32.totalorder %s28, 5
      %p162 = por %p160, %p161
      %p163 = scmp.ne.s32.totalorder %s152, %s153
      %p164 = scmp.eq.s32.totalorder %s28, 0
      %p165 = por %p163, %p164
      %p166 = scmp.ne.s32.totalorder %s152, %s153
      %p167 = scmp.eq.s32.totalorder %s29, 5
      %p168 = por %p166, %p167
      %p170 = scmp.ne.s32.totalorder %s153, %s169
      %p171 = scmp.eq.s32.totalorder %s29, 0
      %p172 = por %p170, %p171
      %s173 = ssub.s32 %s30, %s42
      %s174 = ssub.s32 %s31, %s38
      %s175 = sor.u32 %s173, %s174
      %p176 = scmp.eq.s32.totalorder %s175, 0
      %s178 = sadd.s32 %s177, 1
      %s179 = scalar_select %p176, %s177, %s178
      %p182 = pneg %p176
      %p183 = scmp.eq.s32.totalorder %s23, 5
      %p184 = por %p182, %p183
      %p185 = scmp.ne.s32.totalorder %s177, %s180
      %p186 = scmp.eq.s32.totalorder %s23, 0
      %p187 = por %p185, %p186
      %p188 = scmp.ne.s32.totalorder %s177, %s180
      %p189 = scmp.eq.s32.totalorder %s28, 5
      %p190 = por %p188, %p189
      %p191 = scmp.ne.s32.totalorder %s180, %s181
      %p192 = scmp.eq.s32.totalorder %s28, 0
      %p193 = por %p191, %p192
      %p194 = scmp.ne.s32.totalorder %s180, %s181
      %p195 = scmp.eq.s32.totalorder %s29, 5
      %p196 = por %p194, %p195
      %p198 = scmp.ne.s32.totalorder %s181, %s197
      %p199 = scmp.eq.s32.totalorder %s29, 0
      %p200 = por %p198, %p199
      %p201 = scmp.le.s32.totalorder 1, %s23
      %p202 = scmp.lt.s32.totalorder %s23, 7
      %p203 = pnand %p201, %p202
      %p204 = pneg %p203
      // Predicated region
      $region9: #{tpu_custom_call.1} parent=5 // pred_check
        _
      $region10: #{tpu_custom_call.1} parent=5 // pred_check_branch
        %206 = sbr.rel (%p203) target = $region12
      $region11: #{tpu_custom_call.1} parent=5 // pred_region
        %s207 = ssub.s32 %s23, 1
      $region12: #{tpu_custom_call.1} parent=5 // pred_fallthru
        _
      %p208 = scmp.lt.s32.totalorder %s23, 6
      // Predicated region
      $region13: #{tpu_custom_call.1} parent=5 // pred_check
        %p209 = pneg %p208
      $region14: #{tpu_custom_call.1} parent=5 // pred_check_branch
        %211 = sbr.rel (%p209) target = $region16
      $region15: #{tpu_custom_call.1} parent=5 // pred_region
        // Predicated region
        $region17: #{tpu_custom_call.1} parent=15 // pred_check
          %p212 = pneg %p55
        $region18: #{tpu_custom_call.1} parent=15 // pred_check_branch
          %214 = sbr.rel (%p212) target = $region20
        $region19: #{tpu_custom_call.1} parent=15 // pred_region
          %s215 = sand.u32 %s45, 1
          %s216 = scalar_lea.sflag [#allocation3], %s215
          %s217 = sand.u32 %s45, 1
          %s218 = smul.addr %s217, 8
          %s219 = scalar_lea.vmem [#allocation2], %s218
          %221 = vsyncadd %s216, 0
          %s222 = smul.addr %s31, 8
          %s223 = scalar_lea.hbm %s0, %s222
          %s225 = sshll.u32 %s223, 4
          %s226 = int_to_ptr.hbm [resolvable:$true] %s225
          %s227 = sshll.u32 %s219, 4
          %s228 = int_to_ptr.vmem [resolvable:$true] %s227
          %230 = dma.hbm_to_vmem [thread:$0]  %s226, 128, %s228, %s216
        $region20: #{tpu_custom_call.1} parent=15 // pred_fallthru
          _
        // Predicated region
        $region21: #{tpu_custom_call.1} parent=15 // pred_check
          %p231 = pneg %p81
        $region22: #{tpu_custom_call.1} parent=15 // pred_check_branch
          %233 = sbr.rel (%p231) target = $region24
        $region23: #{tpu_custom_call.1} parent=15 // pred_region
          %s234 = sand.u32 %s23, 1
          %s235 = scalar_lea.sflag [#allocation6], %s234
          %s236 = sand.u32 %s71, 1
          %s237 = smul.addr %s236, 32
          %s238 = scalar_lea.vmem [#allocation5], %s237
          %240 = vsyncadd %s235, 0
          %s241 = smul.addr %s30, 4
          %s242 = smul.addr %s241, 8
          %s243 = scalar_lea.hbm %s1, %s242
          %s244 = sshll.u32 %s243, 4
          %s245 = int_to_ptr.hbm [resolvable:$true] %s244
          %s246 = sshll.u32 %s238, 4
          %s247 = int_to_ptr.vmem [resolvable:$true] %s246
          %252 = dma.hbm_to_vmem [thread:$0]  %s245, 512, %s247, %s235, 128, 128, 8
        $region24: #{tpu_custom_call.1} parent=15 // pred_fallthru
          _
        // Predicated region
        $region25: #{tpu_custom_call.1} parent=15 // pred_check
          %p253 = pneg %p107
        $region26: #{tpu_custom_call.1} parent=15 // pred_check_branch
          %255 = sbr.rel (%p253) target = $region28
        $region27: #{tpu_custom_call.1} parent=15 // pred_region
          %s256 = sand.u32 %s23, 1
          %s257 = scalar_lea.sflag [#allocation6], %s256
          %s258 = sand.u32 %s97, 1
          %s259 = scalar_lea.vmem [#allocation7], %s258
          %261 = vsyncadd %s257, 0
          %s262 = scalar_lea.hbm %s2, %s30
          %s264 = sshll.u32 %s262, 4
          %s265 = int_to_ptr.hbm [resolvable:$true] %s264
          %s266 = sshll.u32 %s259, 4
          %s267 = int_to_ptr.vmem [resolvable:$true] %s266
          %269 = dma.hbm_to_vmem [thread:$0]  %s265, 16, %s267, %s257
        $region28: #{tpu_custom_call.1} parent=15 // pred_fallthru
          _
        // Predicated region
        $region29: #{tpu_custom_call.1} parent=15 // pred_check
          %p270 = pneg %p133
        $region30: #{tpu_custom_call.1} parent=15 // pred_check_branch
          %272 = sbr.rel (%p270) target = $region32
        $region31: #{tpu_custom_call.1} parent=15 // pred_region
          %s273 = sand.u32 %s23, 1
          %s274 = scalar_lea.sflag [#allocation9], %s273
          %s275 = sand.u32 %s123, 1
          %s276 = smul.addr %s275, 384
          %s277 = scalar_lea.vmem [#allocation8], %s276
          %279 = vsyncadd %s274, 0
          %s280 = smul.addr %s30, 48
          %s281 = smul.addr %s280, 8
          %s282 = scalar_lea.hbm %s3, %s281
          %s283 = sshll.u32 %s282, 4
          %s284 = int_to_ptr.hbm [resolvable:$true] %s283
          %s285 = sshll.u32 %s277, 4
          %s286 = int_to_ptr.vmem [resolvable:$true] %s285
          %291 = dma.hbm_to_vmem [thread:$0]  %s284, 6144, %s286, %s274, 384, 384, 24
        $region32: #{tpu_custom_call.1} parent=15 // pred_fallthru
          _
        // Predicated region
        $region33: #{tpu_custom_call.1} parent=15 // pred_check
          %p292 = pneg %p159
        $region34: #{tpu_custom_call.1} parent=15 // pred_check_branch
          %294 = sbr.rel (%p292) target = $region36
        $region35: #{tpu_custom_call.1} parent=15 // pred_region
          %s295 = sand.u32 %s23, 1
          %s296 = scalar_lea.sflag [#allocation9], %s295
          %s297 = sand.u32 %s149, 1
          %s298 = smul.addr %s297, 3
          %s299 = scalar_lea.vmem [#allocation10], %s298
          %301 = vsyncadd %s296, 0
          %s302 = smul.addr %s30, 3
          %s303 = scalar_lea.hbm %s4, %s302
          %s305 = sshll.u32 %s303, 4
          %s306 = int_to_ptr.hbm [resolvable:$true] %s305
          %s307 = sshll.u32 %s299, 4
          %s308 = int_to_ptr.vmem [resolvable:$true] %s307
          %310 = dma.hbm_to_vmem [thread:$0]  %s306, 48, %s308, %s296
        $region36: #{tpu_custom_call.1} parent=15 // pred_fallthru
          _
      $region16: #{tpu_custom_call.1} parent=5 // pred_fallthru
        _
      %p311 = scmp.le.s32.totalorder 1, %s23
      %p312 = scmp.lt.s32.totalorder %s23, 7
      %p313 = pnand %p311, %p312
      %p314 = pneg %p313
      // Predicated region
      $region37: #{tpu_custom_call.1} parent=5 // pred_check
        _
      $region38: #{tpu_custom_call.1} parent=5 // pred_check_branch
        %316 = sbr.rel (%p313) target = $region40
      $region39: #{tpu_custom_call.1} parent=5 // pred_region
        %s317 = ssub.s32 %s23, 1
        %s318 = sand.u32 %s48, 1
        %s319 = scalar_lea.sflag [#allocation3], %s318
        %s320 = sand.u32 %s48, 1
        %s321 = smul.addr %s320, 8
        %s322 = scalar_lea.vmem [#allocation2], %s321
        // Predicated region
        $region41: #{tpu_custom_call.1} parent=39 // pred_check
          %p323 = pneg %p61
        $region42: #{tpu_custom_call.1} parent=39 // pred_check_branch
          %325 = sbr.rel (%p323) target = $region44
        $region43: #{tpu_custom_call.1} parent=39 // pred_region
          %327 = dma.done %s319, 128
        $region44: #{tpu_custom_call.1} parent=39 // pred_fallthru
          _
        %s328 = sand.u32 %s28, 1
        %s329 = scalar_lea.sflag [#allocation6], %s328
        %s330 = sand.u32 %s74, 1
        %s331 = smul.addr %s330, 32
        %s332 = scalar_lea.vmem [#allocation5], %s331
        // Predicated region
        $region45: #{tpu_custom_call.1} parent=39 // pred_check
          %p333 = pneg %p87
        $region46: #{tpu_custom_call.1} parent=39 // pred_check_branch
          %335 = sbr.rel (%p333) target = $region48
        $region47: #{tpu_custom_call.1} parent=39 // pred_region
          %337 = dma.done %s329, 512
        $region48: #{tpu_custom_call.1} parent=39 // pred_fallthru
          _
        %s338 = sand.u32 %s28, 1
        %s339 = scalar_lea.sflag [#allocation6], %s338
        %s340 = sand.u32 %s100, 1
        %s341 = scalar_lea.vmem [#allocation7], %s340
        // Predicated region
        $region49: #{tpu_custom_call.1} parent=39 // pred_check
          %p342 = pneg %p113
        $region50: #{tpu_custom_call.1} parent=39 // pred_check_branch
          %344 = sbr.rel (%p342) target = $region52
        $region51: #{tpu_custom_call.1} parent=39 // pred_region
          %346 = dma.done %s339, 16
        $region52: #{tpu_custom_call.1} parent=39 // pred_fallthru
          _
        %s347 = sand.u32 %s28, 1
        %s348 = scalar_lea.sflag [#allocation9], %s347
        %s349 = sand.u32 %s126, 1
        %s350 = smul.addr %s349, 384
        %s351 = scalar_lea.vmem [#allocation8], %s350
        // Predicated region
        $region53: #{tpu_custom_call.1} parent=39 // pred_check
          %p352 = pneg %p139
        $region54: #{tpu_custom_call.1} parent=39 // pred_check_branch
          %354 = sbr.rel (%p352) target = $region56
        $region55: #{tpu_custom_call.1} parent=39 // pred_region
          %356 = dma.done %s348, 6144
        $region56: #{tpu_custom_call.1} parent=39 // pred_fallthru
          _
        %s357 = sand.u32 %s28, 1
        %s358 = scalar_lea.sflag [#allocation9], %s357
        %s359 = sand.u32 %s152, 1
        %s360 = smul.addr %s359, 3
        %s361 = scalar_lea.vmem [#allocation10], %s360
        // Predicated region
        $region57: #{tpu_custom_call.1} parent=39 // pred_check
          %p362 = pneg %p165
        $region58: #{tpu_custom_call.1} parent=39 // pred_check_branch
          %364 = sbr.rel (%p362) target = $region60
        $region59: #{tpu_custom_call.1} parent=39 // pred_region
          %366 = dma.done %s358, 48
        $region60: #{tpu_custom_call.1} parent=39 // pred_fallthru
          _
        %s367 = sand.u32 %s48, 1
        %s368 = scalar_lea.sflag [#allocation3], %s367
        %s369 = sand.u32 %s48, 1
        %s370 = smul.addr %s369, 8
        %s371 = scalar_lea.vmem [#allocation2], %s370
        %p372 = pneg %p61
        %p373 = pneg %p58
        %s374 = sand.u32 %s28, 1
        %s375 = scalar_lea.sflag [#allocation6], %s374
        %s376 = sand.u32 %s74, 1
        %s377 = smul.addr %s376, 32
        %s378 = scalar_lea.vmem [#allocation5], %s377
        %p379 = pneg %p87
        %p380 = pneg %p84
        %s381 = sand.u32 %s28, 1
        %s382 = scalar_lea.sflag [#allocation6], %s381
        %s383 = sand.u32 %s100, 1
        %s384 = scalar_lea.vmem [#allocation7], %s383
        %p385 = pneg %p113
        %p386 = pneg %p110
        %s387 = sand.u32 %s28, 1
        %s388 = scalar_lea.sflag [#allocation9], %s387
        %s389 = sand.u32 %s126, 1
        %s390 = smul.addr %s389, 384
        %s391 = scalar_lea.vmem [#allocation8], %s390
        %p392 = pneg %p139
        %p393 = pneg %p136
        %s394 = sand.u32 %s28, 1
        %s395 = scalar_lea.sflag [#allocation9], %s394
        %s396 = sand.u32 %s152, 1
        %s397 = smul.addr %s396, 3
        %s398 = scalar_lea.vmem [#allocation10], %s397
        %p399 = pneg %p165
        %p400 = pneg %p162
        %p401 = pneg %p193
        %p402 = pneg %p190
        %s403 = sand.u32 %s180, 1
        %s404 = scalar_lea.sflag [#allocation4], %s403
        %s405 = sand.u32 %s180, 1
        %s406 = smul.addr %s405, 24
        %s407 = scalar_lea.vmem [#allocation11], %s406
        %v408 = vld [vmem:[%s322] sm:$0xff]
        %v409 = vld [vmem:[%s332] sm:$0xff]
        %v410 = vld [vmem:[%s332 + $0x8] sm:$0xff]
        %v411 = vld [vmem:[%s332 + $0x10] sm:$0xff]
        %v412 = vld [vmem:[%s332 + $0x18] sm:$0xff]
        %v413 = vld [vmem:[%s351] sm:$0xff]
        %v414 = vld [vmem:[%s351 + $0x8] sm:$0xff]
        %v415 = vld [vmem:[%s351 + $0x10] sm:$0xff]
        %v416 = vld [vmem:[%s351 + $0x18] sm:$0xff]
        %v417 = vld [vmem:[%s351 + $0x20] sm:$0xff]
        %v418 = vld [vmem:[%s351 + $0x28] sm:$0xff]
        %v419 = vld [vmem:[%s351 + $0x30] sm:$0xff]
        %v420 = vld [vmem:[%s351 + $0x38] sm:$0xff]
        %v421 = vld [vmem:[%s351 + $0x40] sm:$0xff]
        %v422 = vld [vmem:[%s351 + $0x48] sm:$0xff]
        %v423 = vld [vmem:[%s351 + $0x50] sm:$0xff]
        %v424 = vld [vmem:[%s351 + $0x58] sm:$0xff]
        %v425 = vld [vmem:[%s351 + $0x60] sm:$0xff]
        %v426 = vld [vmem:[%s351 + $0x68] sm:$0xff]
        %v427 = vld [vmem:[%s351 + $0x70] sm:$0xff]
        %v428 = vld [vmem:[%s351 + $0x78] sm:$0xff]
        %v429 = vld [vmem:[%s351 + $0x80] sm:$0xff]
        %v430 = vld [vmem:[%s351 + $0x88] sm:$0xff]
        %v431 = vld [vmem:[%s351 + $0x90] sm:$0xff]
        %v432 = vld [vmem:[%s351 + $0x98] sm:$0xff]
        %v433 = vld [vmem:[%s351 + $0xa0] sm:$0xff]
        %v434 = vld [vmem:[%s351 + $0xa8] sm:$0xff]
        %v435 = vld [vmem:[%s351 + $0xb0] sm:$0xff]
        %v436 = vld [vmem:[%s351 + $0xb8] sm:$0xff]
        %v437 = vld [vmem:[%s351 + $0xc0] sm:$0xff]
        %v438 = vld [vmem:[%s351 + $0xc8] sm:$0xff]
        %v439 = vld [vmem:[%s351 + $0xd0] sm:$0xff]
        %v440 = vld [vmem:[%s351 + $0xd8] sm:$0xff]
        %v441 = vld [vmem:[%s351 + $0xe0] sm:$0xff]
        %v442 = vld [vmem:[%s351 + $0xe8] sm:$0xff]
        %v443 = vld [vmem:[%s351 + $0xf0] sm:$0xff]
        %v444 = vld [vmem:[%s351 + $0xf8] sm:$0xff]
        %v445 = vld [vmem:[%s351 + $0x100] sm:$0xff]
        %v446 = vld [vmem:[%s351 + $0x108] sm:$0xff]
        %v447 = vld [vmem:[%s351 + $0x110] sm:$0xff]
        %v448 = vld [vmem:[%s351 + $0x118] sm:$0xff]
        %v449 = vld [vmem:[%s351 + $0x120] sm:$0xff]
        %v450 = vld [vmem:[%s351 + $0x128] sm:$0xff]
        %v451 = vld [vmem:[%s351 + $0x130] sm:$0xff]
        %v452 = vld [vmem:[%s351 + $0x138] sm:$0xff]
        %v453 = vld [vmem:[%s351 + $0x140] sm:$0xff]
        %v454 = vld [vmem:[%s351 + $0x148] sm:$0xff]
        %v455 = vld [vmem:[%s351 + $0x150] sm:$0xff]
        %v456 = vld [vmem:[%s351 + $0x158] sm:$0xff]
        %v457 = vld [vmem:[%s351 + $0x160] sm:$0xff]
        %v458 = vld [vmem:[%s351 + $0x168] sm:$0xff]
        %v459 = vld [vmem:[%s351 + $0x170] sm:$0xff]
        %v460 = vld [vmem:[%s351 + $0x178] sm:$0xff]
        %v461 = vld [vmem:[%s341] sm:$0x1]
        %v463 = vperm.slane %v461, 0
        %vm465 = vcmask 261120
        %v467 = vsel %vm465, %v408, 0
        %469 = vmatpush.msra.mxu0 0.0
        %470 = vmatpush.msra.mxu0 0.0
        %471 = vmatpush.msra.mxu0 0.0
        %472 = vmatpush.msra.mxu0 0.0
        %473 = vmatpush.msra.mxu0 0.0
        %474 = vmatpush.msra.mxu0 0.0
        %475 = vmatpush.msra.mxu0 0.0
        %476 = vmatpush.msra.mxu0 0.0
        %477 = vmatpush.msra.mxu0 0.0
        %478 = vmatpush.msra.mxu0 0.0
        %479 = vmatpush.msra.mxu0 0.0
        %480 = vmatpush.msra.mxu0 0.0
        %481 = vmatpush.msra.mxu0 %v412
        %482 = vmatpush.msra.mxu0 %v411
        %483 = vmatpush.msra.mxu0 %v410
        %484 = vmatpush.msra.mxu0 %v409
        %485 = vmatmul.f32.gmra.mxu0 %v467
        %v486 = vpop.f32.mrf.mxu0
        %v487 = vadd.f32 %v463, %v486
        %488 = vdwg.mxu0
        %v489 = vmax.f32 %v487, 0.0
        %v490 = vld [vmem:[%s361] sm:$0x7]
        %v492 = vperm.slane %v490, 0
        %v493 = vperm.slane %v490, 1
        %v494 = vperm.slane %v490, 2
        %498 = vmatpush.msra.mxu0 %v458
        %499 = vmatpush.msra.mxu0 %v455
        %500 = vmatpush.msra.mxu0 %v452
        %501 = vmatpush.msra.mxu0 %v449
        %502 = vmatpush.msra.mxu0 %v446
        %503 = vmatpush.msra.mxu0 %v443
        %504 = vmatpush.msra.mxu0 %v440
        %505 = vmatpush.msra.mxu0 %v437
        %506 = vmatpush.msra.mxu0 %v434
        %507 = vmatpush.msra.mxu0 %v431
        %508 = vmatpush.msra.mxu0 %v428
        %509 = vmatpush.msra.mxu0 %v425
        %510 = vmatpush.msra.mxu0 %v422
        %511 = vmatpush.msra.mxu0 %v419
        %512 = vmatpush.msra.mxu0 %v416
        %513 = vmatpush.msra.mxu0 %v413
        %514 = vmatmul.f32.gmra.mxu0 %v489
        %v515 = vpop.f32.mrf.mxu0
        %v516 = vadd.f32 %v492, %v515
        %517 = vdwg.mxu0
        %518 = vmatpush.msra.mxu0 %v459
        %519 = vmatpush.msra.mxu0 %v456
        %520 = vmatpush.msra.mxu0 %v453
        %521 = vmatpush.msra.mxu0 %v450
        %522 = vmatpush.msra.mxu0 %v447
        %523 = vmatpush.msra.mxu0 %v444
        %524 = vmatpush.msra.mxu0 %v441
        %525 = vmatpush.msra.mxu0 %v438
        %526 = vmatpush.msra.mxu0 %v435
        %527 = vmatpush.msra.mxu0 %v432
        %528 = vmatpush.msra.mxu0 %v429
        %529 = vmatpush.msra.mxu0 %v426
        %530 = vmatpush.msra.mxu0 %v423
        %531 = vmatpush.msra.mxu0 %v420
        %532 = vmatpush.msra.mxu0 %v417
        %533 = vmatpush.msra.mxu0 %v414
        %534 = vmatmul.f32.gmra.mxu0 %v489
        %v535 = vpop.f32.mrf.mxu0
        %v536 = vadd.f32 %v493, %v535
        %537 = vdwg.mxu0
        %538 = vmatpush.msra.mxu0 %v460
        %539 = vmatpush.msra.mxu0 %v457
        %540 = vmatpush.msra.mxu0 %v454
        %541 = vmatpush.msra.mxu0 %v451
        %542 = vmatpush.msra.mxu0 %v448
        %543 = vmatpush.msra.mxu0 %v445
        %544 = vmatpush.msra.mxu0 %v442
        %545 = vmatpush.msra.mxu0 %v439
        %546 = vmatpush.msra.mxu0 %v436
        %547 = vmatpush.msra.mxu0 %v433
        %548 = vmatpush.msra.mxu0 %v430
        %549 = vmatpush.msra.mxu0 %v427
        %550 = vmatpush.msra.mxu0 %v424
        %551 = vmatpush.msra.mxu0 %v421
        %552 = vmatpush.msra.mxu0 %v418
        %553 = vmatpush.msra.mxu0 %v415
        %554 = vmatmul.f32.gmra.mxu0 %v489
        %v555 = vpop.f32.mrf.mxu0
        %v556 = vadd.f32 %v494, %v555
        %557 = vdwg.mxu0
        %v558 = vmax.f32 %v516, %v536
        %v559 = vmax.f32 %v558, %v556
        %560 = vmax.xlane.f32.xlu0 %v559
        %v561 = vpop.xlane.xlu0 %560
        %v562 = vsub.f32 %v516, %v561
        %v563 = vsub.f32 %v536, %v561
        %v564 = vsub.f32 %v556, %v561
        %v565 = vmul.f32 %v562, 1.442695
        %v566 = vpow.pop %v565
        %v567 = vmul.f32 %v563, 1.442695
        %v568 = vpow.pop %v567
        %v569 = vmul.f32 %v564, 1.442695
        %v570 = vpow.pop %v569
        %v571 = vadd.f32 %v566, %v568
        %v572 = vadd.f32 %v571, %v570
        %573 = vadd.xlane.f32.xlu0 %v572
        %v574 = vpop.xlane.xlu0 %573
        %v575 = vlog2.pop %v574
        %v576 = vmul.f32 %v575, 0.6931472
        %v577 = vsub.f32 %v562, %v576
        %v578 = vsub.f32 %v563, %v576
        %v579 = vsub.f32 %v564, %v576
        %580 = vst [vmem:[%s407] sm:$0xff] %v577
        %581 = vst [vmem:[%s407 + $0x8] sm:$0xff] %v578
        %582 = vst [vmem:[%s407 + $0x10] sm:$0xff] %v579
        %s583 = sand.u32 %s180, 1
        %s584 = scalar_lea.sflag [#allocation4], %s583
        %s585 = sand.u32 %s180, 1
        %s586 = smul.addr %s585, 24
        %s587 = scalar_lea.vmem [#allocation11], %s586
        // Predicated region
        $region61: #{tpu_custom_call.1} parent=39 // pred_check
          %p588 = pneg %p190
        $region62: #{tpu_custom_call.1} parent=39 // pred_check_branch
          %590 = sbr.rel (%p588) target = $region64
        $region63: #{tpu_custom_call.1} parent=39 // pred_region
          %592 = vsyncadd %s584, 0
          %s593 = smul.addr %s33, 3
          %s594 = smul.addr %s32, 9
          %s595 = sadd.s32 %s593, %s594
          %s596 = smul.addr %s595, 8
          %s597 = scalar_lea.hbm %s5, %s596
          %s599 = sshll.u32 %s587, 4
          %s600 = int_to_ptr.vmem [resolvable:$true] %s599
          %s601 = sshll.u32 %s597, 4
          %s602 = int_to_ptr.hbm [resolvable:$true] %s601
          %604 = dma.vmem_to_hbm [thread:$0]  %s600, 384, %s602, %s584
        $region64: #{tpu_custom_call.1} parent=39 // pred_fallthru
          _
      $region40: #{tpu_custom_call.1} parent=5 // pred_fallthru
        _
      %p605 = scmp.le.s32.totalorder 2, %s23
      // Predicated region
      $region65: #{tpu_custom_call.1} parent=5 // pred_check
        %p606 = pneg %p605
      $region66: #{tpu_custom_call.1} parent=5 // pred_check_branch
        %608 = sbr.rel (%p606) target = $region68
      $region67: #{tpu_custom_call.1} parent=5 // pred_region
        %s609 = ssub.s32 %s23, 2
        // Predicated region
        $region69: #{tpu_custom_call.1} parent=67 // pred_check
          %p610 = pneg %p196
        $region70: #{tpu_custom_call.1} parent=67 // pred_check_branch
          %612 = sbr.rel (%p610) target = $region72
        $region71: #{tpu_custom_call.1} parent=67 // pred_region
          %s613 = sand.u32 %s181, 1
          %s614 = scalar_lea.sflag [#allocation4], %s613
          %s615 = sand.u32 %s181, 1
          %s616 = smul.addr %s615, 24
          %s617 = scalar_lea.vmem [#allocation11], %s616
          %619 = dma.done %s614, 384
        $region72: #{tpu_custom_call.1} parent=67 // pred_fallthru
          _
      $region68: #{tpu_custom_call.1} parent=5 // pred_fallthru
        _
    $region6: #{tpu_custom_call.1} parent=1 // loop_footer
      %s27 = sadd.s32 1, %s23
    $region7: #{tpu_custom_call.1} parent=1 // loop_footer_branch
      %22 = sbr.rel target = $region3
    $region8: #{tpu_custom_call.1} parent=1 // loop_exit
      _
    %620 = vsyncpa [#allocation3], 1
    %s621 = scalar_lea.sflag [#allocation3], 1
    %622 = vsyncpa %s621, 1
    %623 = vsyncpa [#allocation6], 1
    %s624 = scalar_lea.sflag [#allocation6], 1
    %625 = vsyncpa %s624, 1
    %626 = vsyncpa [#allocation9], 1
    %s627 = scalar_lea.sflag [#allocation9], 1
    %628 = vsyncpa %s627, 1
    %629 = vsyncpa [#allocation4], 1
    %s630 = scalar_lea.sflag [#allocation4], 1
    %631 = vsyncpa %s630, 1

</llo_original>
